<compile_context>
chip_gen: v6e
topology: v6e:2x2x1
jax: 0.10.0
libtpu: 0.0.40
codegen_flags: <defaults>
</compile_context>

<pallas_src>
import numpy as np
import jax
import jax.numpy as jnp
from jax import lax
from jax.experimental import pallas as pl
from jax.experimental.pallas import tpu as pltpu


# ----------------------------------------------------------------------------
# Host-side glue: TPS constants (same math as TpsGridGen.__init__ / compute_L_inverse)
# ----------------------------------------------------------------------------
def _compute_L_inverse(px, py):
    # px, py: (N,) float64 control-point coordinates
    N = px.shape[0]
    dx = px[:, None] - px[None, :]
    dy = py[:, None] - py[None, :]
    d2 = dx * dx + dy * dy
    d2 = np.where(d2 == 0.0, 1.0, d2)
    K = d2 * np.log(d2)
    O = np.ones((N, 1), dtype=np.float64)
    P = np.concatenate([O, px[:, None], py[:, None]], axis=1)        # (N, 3)
    L = np.block([[K, P], [P.T, np.zeros((3, 3))]])                  # (N+3, N+3)
    # TODO(synk): torch.inverse has no Pallas equivalent; host numpy inverse
    # (runs once at construction, N+3 <= 39).
    return np.linalg.inv(L).astype(np.float32)


def _vmem_limit_bytes():
    """Chip-aware VMEM limit: <= half physical, <= 48 MiB, >= 16 MiB."""
    try:
        cap = int(getattr(pltpu.get_tpu_info(), "vmem_capacity_bytes", 0)) or (64 << 20)
    except Exception:
        cap = 64 << 20                     # conservative default (v7x per-core VMEM)
    return max(16 << 20, min(cap // 2, 48 << 20))


def _pick_chunk(HW, B, N, fit_budget_bytes):
    """Lane width CW of one grid step over the flattened (2B, H*W) output.

    CW must divide H*W and be a multiple of 128 (lane-dense, unmasked stores).
    Live-VMEM model: basis scratch (N+3, CW) + double-buffered (2B, CW) output.
    Prefer >= 2 grid steps (output write-back overlap; v7x 2-TC sharding of the
    'parallel' axis), otherwise the largest chunk that fits the budget.
    """
    def live_bytes(cw):
        return 4 * ((N + 3) * cw + 2 * (2 * B) * cw) + (8 << 10)

    cands = [d for d in range(128, HW + 1, 128) if HW % d == 0]
    if not cands:
        # Only for tiny grids where H*W has no multiple-of-128 divisor; a single
        # full-width block (block shape == full array shape) is still legal.
        return HW
    fits = [d for d in cands if live_bytes(d) <= fit_budget_bytes]
    if not fits:
        return cands[0]
    multi = [d for d in fits if HW // d >= 2]
    return max(multi) if multi else max(fits)


def _pick_subtile(CW):
    """Inner basis-generation tile width (bounds register pressure / code size)."""
    for s in (256, 128):
        if CW % s == 0:
            return s
    return CW   # non-lane-aligned CW only happens for tiny grids


# ----------------------------------------------------------------------------
# Pallas kernel: warped grid = coeff @ [U; 1; x; y]  (one MXU matmul per chunk)
# ----------------------------------------------------------------------------
def _make_tps_pallas(H, W, N, B):
    HW = H * W
    K = N + 3
    limit = _vmem_limit_bytes()
    CW = _pick_chunk(HW, B, N, int(limit * 0.6))
    SUB = _pick_subtile(CW)
    num_steps = HW // CW
    n_sub = CW // SUB
    inv_w = 1.0 / float(W)
    step_x = 2.0 / (W - 1) if W > 1 else 0.0
    step_y = 2.0 / (H - 1) if H > 1 else 0.0

    def kernel(coeff_ref, cp_ref, out_ref, basis_ref):
        # coeff_ref: (2B, N+3) VMEM  rows 0..B-1 -> x', rows B..2B-1 -> y';
        #            columns ordered [W_0..W_{N-1}, A_0, A_1, A_2]
        # cp_ref   : (N, 2)  VMEM    control points (x, y)
        # out_ref  : (2B, CW)        output block over the flattened pixel axis
        # basis_ref: (N+3, CW) VMEM  scratch, rows [U_0..U_{N-1}, 1, x, y]
        c = pl.program_id(0)
        base = c * CW                                     # flat pixel offset

        cp = cp_ref[...]
        # hoisted out of the loop: JAX does not CSE broadcast_in_dim
        px = jnp.broadcast_to(cp[:, 0:1], (N, SUB))
        py = jnp.broadcast_to(cp[:, 1:2], (N, SUB))

        def build(i, carry):
            lane0 = pl.multiple_of(i * SUB, SUB)
            ji = jax.lax.broadcasted_iota(jnp.int32, (1, SUB), 1) + (base + i * SUB)
            jf = ji.astype(jnp.float32)                   # exact: H*W << 2^24
            # flat index -> (row, col); +0.5 keeps floor() exact for H*W < ~4e6
            rowf = jnp.floor((jf + 0.5) * inv_w)
            colf = jf - rowf * float(W)
            gx = colf * step_x - 1.0                      # (1, SUB)
            gy = rowf * step_y - 1.0
            dx = gx - px                                  # (N, SUB): k on sublanes
            dy = gy - py
            d2 = dx * dx + dy * dy
            d2 = jnp.where(d2 == 0.0, 1.0, d2)            # matches dist_squared[d==0]=1
            basis_ref[pl.ds(0, N), pl.ds(lane0, SUB)] = d2 * jnp.log(d2)
            basis_ref[pl.ds(N, 1), pl.ds(lane0, SUB)] = jnp.ones((1, SUB), jnp.float32)
            basis_ref[pl.ds(N + 1, 1), pl.ds(lane0, SUB)] = gx
            basis_ref[pl.ds(N + 2, 1), pl.ds(lane0, SUB)] = gy
            return carry

        lax.fori_loop(0, n_sub, build, 0)

        # One MXU contraction covering all batches and both x'/y' planes.
        out_ref[...] = jnp.dot(coeff_ref[...], basis_ref[...],
                               preferred_element_type=jnp.float32)

    cost = pl.CostEstimate(
        flops=int(2 * (2 * B) * K * HW + 8 * N * HW),
        transcendentals=int(N * HW),
        bytes_accessed=int(4 * (2 * B * HW + 2 * B * K + 2 * N)),
    )

    return pl.pallas_call(
        kernel,
        out_shape=jax.ShapeDtypeStruct((2 * B, HW), jnp.float32),
        grid_spec=pltpu.PrefetchScalarGridSpec(
            num_scalar_prefetch=0,
            grid=(num_steps,),
            in_specs=[
                pl.BlockSpec((2 * B, K), lambda c: (0, 0)),   # coefficients (full)
                pl.BlockSpec((N, 2), lambda c: (0, 0)),       # control points (full)
            ],
            out_specs=pl.BlockSpec((2 * B, CW), lambda c: (0, c)),
            scratch_shapes=[pltpu.VMEM((K, CW), jnp.float32)],
        ),
        compiler_params=pltpu.CompilerParams(
            # Chunks are independent -> "parallel" (v7x can shard across its 2 TCs).
            # TODO(synk): if xprof shows only one v7x core busy, switch this axis
            # to pltpu.CORE_PARALLEL.
            dimension_semantics=("parallel",),
            vmem_limit_bytes=int(limit),
        ),
        cost_estimate=cost,
    )


# ----------------------------------------------------------------------------
# Module wrapper
# ----------------------------------------------------------------------------
class TpsGridGenPallas:
    """JAX/Pallas port of TpsGridGen.forward (thin-plate-spline sampling grid)."""

    def __init__(self, out_h=240, out_w=240, use_regular_grid=True, grid_size=6,
                 reg_factor=1):
        assert use_regular_grid, "only the regular-grid TPS variant is implemented"
        self.out_h, self.out_w = out_h, out_w
        # NOTE: reg_factor is stored but -- exactly like the reference forward
        # pass -- never used in the transformation math.
        self.reg_factor = reg_factor
        self.N = grid_size * grid_size
        N = self.N

        # regular sampling grid (kept only for the pure-JAX reference check)
        gX, gY = np.meshgrid(np.linspace(-1, 1, out_w), np.linspace(-1, 1, out_h))
        self.grid_X = jnp.asarray(gX.astype(np.float32))              # (H, W)
        self.grid_Y = jnp.asarray(gY.astype(np.float32))              # (H, W)

        # control points: P_Y, P_X = np.meshgrid(axis, axis); reshape(-1, 1)
        axis_coords = np.linspace(-1, 1, grid_size)
        P_Y, P_X = np.meshgrid(axis_coords, axis_coords)
        self.P_X = P_X.reshape(-1).astype(np.float64)                 # (N,)
        self.P_Y = P_Y.reshape(-1).astype(np.float64)                 # (N,)

        Li = _compute_L_inverse(self.P_X, self.P_Y)                   # (N+3, N+3)
        self.Li_kk = jnp.asarray(Li[:N, :N])                          # (N, N)
        self.Li_ak = jnp.asarray(Li[N:, :N])                          # (3, N)

        self._cp = jnp.asarray(
            np.stack([self.P_X, self.P_Y], axis=1).astype(np.float32))  # (N, 2)
        self._cache = {}

    def _fwd(self, B):
        fn = self._cache.get(B)
        if fn is None:
            fn = _make_tps_pallas(self.out_h, self.out_w, self.N, B)
            self._cache[B] = fn
        return fn

    def __call__(self, theta):
        # theta: (B, 2N) or (B, 2N, 1, 1) float32
        theta = jnp.asarray(theta, jnp.float32).reshape(theta.shape[0], -1)
        B = theta.shape[0]
        N, H, W = self.N, self.out_h, self.out_w

        q_x = theta[:, :N]                                            # (B, N)
        q_y = theta[:, N:2 * N]

        # tiny coefficient solves stay as plain-JAX glue:
        #   W = Li[:N,:N] @ Q,  A = Li[N:,:N] @ Q   (per batch, N <= 36)
        W_X = q_x @ self.Li_kk.T                                      # (B, N)
        W_Y = q_y @ self.Li_kk.T
        A_X = q_x @ self.Li_ak.T                                      # (B, 3)
        A_Y = q_y @ self.Li_ak.T

        # column order matches the basis rows [U_0..U_{N-1}, 1, x, y]
        coeff = jnp.concatenate(
            [jnp.concatenate([W_X, A_X], axis=1),
             jnp.concatenate([W_Y, A_Y], axis=1)], axis=0)            # (2B, N+3)

        flat = self._fwd(B)(coeff, self._cp)                          # (2B, H*W)
        ox = flat[:B].reshape(B, H, W)
        oy = flat[B:].reshape(B, H, W)
        # TODO(synk): the interleave below only exists to match the PyTorch
        # torch.cat(..., dim=3) output; consumers that accept planar X/Y planes
        # should take (ox, oy) directly and skip this extra HBM pass.
        return jnp.stack([ox, oy], axis=-1)                           # (B, H, W, 2)


# ----------------------------------------------------------------------------
# Pure-JAX reference (mirrors TpsGridGen.apply_transformation) for sanity check
# ----------------------------------------------------------------------------
def _reference(tps, theta):
    theta = jnp.asarray(theta, jnp.float32).reshape(theta.shape[0], -1)
    N = tps.N
    q_x, q_y = theta[:, :N], theta[:, N:2 * N]
    W_X = q_x @ tps.Li_kk.T
    W_Y = q_y @ tps.Li_kk.T
    A_X = q_x @ tps.Li_ak.T
    A_Y = q_y @ tps.Li_ak.T
    gx, gy = tps.grid_X, tps.grid_Y                                   # (H, W)
    px = jnp.asarray(tps.P_X, jnp.float32)
    py = jnp.asarray(tps.P_Y, jnp.float32)
    dx = gx[..., None] - px[None, None, :]                            # (H, W, N)
    dy = gy[..., None] - py[None, None, :]
    d2 = dx * dx + dy * dy
    d2 = jnp.where(d2 == 0.0, 1.0, d2)
    U = d2 * jnp.log(d2)                                              # (H, W, N)
    rbf_x = jnp.einsum("hwn,bn->bhw", U, W_X)
    rbf_y = jnp.einsum("hwn,bn->bhw", U, W_Y)
    xprime = (A_X[:, 0, None, None] + A_X[:, 1, None, None] * gx
              + A_X[:, 2, None, None] * gy + rbf_x)
    yprime = (A_Y[:, 0, None, None] + A_Y[:, 1, None, None] * gx
              + A_Y[:, 2, None, None] * gy + rbf_y)
    return jnp.stack([xprime, yprime], axis=-1)


if __name__ == "__main__":
    # small shapes: out_h = out_w = 16, grid_size = 3 -> N = 9, theta (2, 18)
    B, out_h, out_w, grid_size = 2, 16, 16, 3
    tps = TpsGridGenPallas(out_h=out_h, out_w=out_w, grid_size=grid_size)

    key = jax.random.PRNGKey(0)
    # perturbed identity TPS parameterization
    base = jnp.concatenate(
        [jnp.asarray(tps.P_X, jnp.float32), jnp.asarray(tps.P_Y, jnp.float32)]
    )[None, :]                                                         # (1, 2N)
    theta = base + 0.1 * jax.random.normal(key, (B, 2 * tps.N), dtype=jnp.float32)

    out = jax.block_until_ready(tps(theta))
    ref = jax.block_until_ready(_reference(tps, theta))

    # tolerance accounts for MXU f32 (multi-pass) accumulation vs VPU reference
    np.testing.assert_allclose(np.asarray(out), np.asarray(ref), rtol=2e-4, atol=2e-4)
    assert out.shape == (B, out_h, out_w, 2)

    print("KERNEL_OK")
</pallas_src>

<mosaic_0001>
module attributes {stable_mosaic.version = 11 : i64} {
  func.func @kernel(%arg0: i32, %arg1: memref<4x12xf32, #tpu.memory_space<vmem>>, %arg2: memref<9x2xf32, #tpu.memory_space<vmem>>, %arg3: memref<4x128xf32, #tpu.memory_space<vmem>>, %arg4: memref<12x128xf32, #tpu.memory_space<vmem>>) attributes {dimension_semantics = [#tpu.dimension_semantics<parallel>], iteration_bounds = array<i64: 2>, scalar_prefetch = 0 : i64, scratch_operands = 1 : i64, tpu.core_type = #tpu.core_type<tc>, window_params = [{pipeline_mode = #tpu.pipeline_mode<synchronous>, transform_indices = @transform_0, window_bounds = array<i64: 4, 12>}, {pipeline_mode = #tpu.pipeline_mode<synchronous>, transform_indices = @transform_1, window_bounds = array<i64: 9, 2>}, {transform_indices = @transform_2, window_bounds = array<i64: 4, 128>}]} {
    %c128_i32 = arith.constant 128 : i32
    %0 = arith.muli %arg0, %c128_i32 : i32
    %c0 = arith.constant 0 : index
    %c0_0 = arith.constant 0 : index
    %1 = vector.load %arg2[%c0, %c0_0] : memref<9x2xf32, #tpu.memory_space<vmem>>, vector<9x2xf32>
    %2 = vector.extract_strided_slice %1 {offsets = [0, 0], sizes = [9, 1], strides = [1, 1]} : vector<9x2xf32> to vector<9x1xf32>
    %3 = vector.shape_cast %2 : vector<9x1xf32> to vector<9x1xf32>
    %4 = vector.broadcast %3 : vector<9x1xf32> to vector<9x128xf32>
    %5 = vector.extract_strided_slice %1 {offsets = [0, 1], sizes = [9, 1], strides = [1, 1]} : vector<9x2xf32> to vector<9x1xf32>
    %6 = vector.shape_cast %5 : vector<9x1xf32> to vector<9x1xf32>
    %7 = vector.broadcast %6 : vector<9x1xf32> to vector<9x128xf32>
    %c0_i32 = arith.constant 0 : i32
    %c128_i32_1 = arith.constant 128 : i32
    %8 = arith.muli %c0_i32, %c128_i32_1 : i32
    %9 = tpu.assume_multiple %8, 128 : i32
    %10 = tpu.iota {dimensions = array<i32: 1>} : vector<1x128xi32>
    %c128_i32_2 = arith.constant 128 : i32
    %11 = arith.muli %c0_i32, %c128_i32_2 : i32
    %12 = arith.addi %0, %11 : i32
    %13 = vector.broadcast %12 : i32 to vector<1x128xi32>
    %14 = arith.addi %10, %13 : vector<1x128xi32>
    %15 = arith.sitofp %14 : vector<1x128xi32> to vector<1x128xf32>
    %cst = arith.constant 5.000000e-01 : f32
    %16 = vector.broadcast %cst : f32 to vector<1x128xf32>
    %17 = arith.addf %15, %16 : vector<1x128xf32>
    %cst_3 = arith.constant 6.250000e-02 : f32
    %18 = vector.broadcast %cst_3 : f32 to vector<1x128xf32>
    %19 = arith.mulf %17, %18 : vector<1x128xf32>
    %20 = math.floor %19 : vector<1x128xf32>
    %cst_4 = arith.constant 1.600000e+01 : f32
    %21 = vector.broadcast %cst_4 : f32 to vector<1x128xf32>
    %22 = arith.mulf %20, %21 : vector<1x128xf32>
    %23 = arith.subf %15, %22 : vector<1x128xf32>
    %cst_5 = arith.constant 0.13333334 : f32
    %24 = vector.broadcast %cst_5 : f32 to vector<1x128xf32>
    %25 = arith.mulf %23, %24 : vector<1x128xf32>
    %cst_6 = arith.constant 1.000000e+00 : f32
    %26 = vector.broadcast %cst_6 : f32 to vector<1x128xf32>
    %27 = arith.subf %25, %26 : vector<1x128xf32>
    %cst_7 = arith.constant 0.13333334 : f32
    %28 = vector.broadcast %cst_7 : f32 to vector<1x128xf32>
    %29 = arith.mulf %20, %28 : vector<1x128xf32>
    %cst_8 = arith.constant 1.000000e+00 : f32
    %30 = vector.broadcast %cst_8 : f32 to vector<1x128xf32>
    %31 = arith.subf %29, %30 : vector<1x128xf32>
    %32 = vector.broadcast %27 : vector<1x128xf32> to vector<9x128xf32>
    %33 = arith.subf %32, %4 : vector<9x128xf32>
    %34 = vector.broadcast %31 : vector<1x128xf32> to vector<9x128xf32>
    %35 = arith.subf %34, %7 : vector<9x128xf32>
    %36 = arith.mulf %33, %33 : vector<9x128xf32>
    %37 = arith.mulf %35, %35 : vector<9x128xf32>
    %38 = arith.addf %36, %37 : vector<9x128xf32>
    %cst_9 = arith.constant 0.000000e+00 : f32
    %39 = vector.broadcast %cst_9 : f32 to vector<9x128xf32>
    %40 = arith.cmpf oeq, %38, %39 : vector<9x128xf32>
    %cst_10 = arith.constant 1.000000e+00 : f32
    %41 = vector.broadcast %cst_10 : f32 to vector<9x128xf32>
    %42 = arith.select %40, %41, %38 : vector<9x128xi1>, vector<9x128xf32>
    %43 = math.log %42 : vector<9x128xf32>
    %44 = arith.mulf %42, %43 : vector<9x128xf32>
    %c0_11 = arith.constant 0 : index
    %45 = arith.index_cast %9 : i32 to index
    %46 = vector.load %arg4[%c0_11, %45] : memref<12x128xf32, #tpu.memory_space<vmem>>, vector<9x128xf32>
    tpu.vector_store %arg4[%c0_11, %45], %44 {strides = array<i32>} : memref<12x128xf32, #tpu.memory_space<vmem>>, vector<9x128xf32>,
    %cst_12 = arith.constant 1.000000e+00 : f32
    %47 = vector.broadcast %cst_12 : f32 to vector<1x128xf32>
    %c9 = arith.constant 9 : index
    %48 = arith.index_cast %9 : i32 to index
    %49 = vector.load %arg4[%c9, %48] : memref<12x128xf32, #tpu.memory_space<vmem>>, vector<1x128xf32>
    tpu.vector_store %arg4[%c9, %48], %47 {strides = array<i32>} : memref<12x128xf32, #tpu.memory_space<vmem>>, vector<1x128xf32>,
    %c10 = arith.constant 10 : index
    %50 = arith.index_cast %9 : i32 to index
    %51 = vector.load %arg4[%c10, %50] : memref<12x128xf32, #tpu.memory_space<vmem>>, vector<1x128xf32>
    tpu.vector_store %arg4[%c10, %50], %27 {strides = array<i32>} : memref<12x128xf32, #tpu.memory_space<vmem>>, vector<1x128xf32>,
    %c11 = arith.constant 11 : index
    %52 = arith.index_cast %9 : i32 to index
    %53 = vector.load %arg4[%c11, %52] : memref<12x128xf32, #tpu.memory_space<vmem>>, vector<1x128xf32>
    tpu.vector_store %arg4[%c11, %52], %31 {strides = array<i32>} : memref<12x128xf32, #tpu.memory_space<vmem>>, vector<1x128xf32>,
    %c1_i32 = arith.constant 1 : i32
    %c0_13 = arith.constant 0 : index
    %c0_14 = arith.constant 0 : index
    %54 = vector.load %arg1[%c0_13, %c0_14] : memref<4x12xf32, #tpu.memory_space<vmem>>, vector<4x12xf32>
    %c0_15 = arith.constant 0 : index
    %c0_16 = arith.constant 0 : index
    %55 = vector.load %arg4[%c0_15, %c0_16] : memref<12x128xf32, #tpu.memory_space<vmem>>, vector<12x128xf32>
    %cst_17 = arith.constant dense<0.000000e+00> : vector<4x128xf32>
    %56 = tpu.matmul %54, %55, %cst_17 {dimension_numbers = #tpu.dot_dimension_numbers<[1], [0], [0], [1], [0, 0, 1, 1], [], []>} : vector<4x12xf32>, vector<12x128xf32>, vector<4x128xf32> -> vector<4x128xf32>
    %c0_18 = arith.constant 0 : index
    %c0_19 = arith.constant 0 : index
    %57 = vector.load %arg3[%c0_18, %c0_19] : memref<4x128xf32, #tpu.memory_space<vmem>>, vector<4x128xf32>
    tpu.vector_store %arg3[%c0_18, %c0_19], %56 {strides = array<i32>} : memref<4x128xf32, #tpu.memory_space<vmem>>, vector<4x128xf32>,
    return
  }
  func.func @transform_0(%arg0: i32) -> (i32, i32) {
    %c0_i32 = arith.constant 0 : i32
    %c0_i32_0 = arith.constant 0 : i32
    %c0_i32_1 = arith.constant 0 : i32
    return %c0_i32, %c0_i32_0 : i32, i32
  }
  func.func @transform_1(%arg0: i32) -> (i32, i32) {
    %c0_i32 = arith.constant 0 : i32
    %c0_i32_0 = arith.constant 0 : i32
    %c0_i32_1 = arith.constant 0 : i32
    return %c0_i32, %c0_i32_0 : i32, i32
  }
  func.func @transform_2(%arg0: i32) -> (i32, i32) {
    %c0_i32 = arith.constant 0 : i32
    %c0_i32_0 = arith.constant 0 : i32
    return %c0_i32, %arg0 : i32, i32
  }
}

</mosaic_0001>

<llo_original>
// kernel: tpu_custom_call.1
$region0: #{tpu_custom_call.1}
  #allocation0 [shape = 'u32[]', space=smem, size = 0x4, offset = 0x4, fixed_abs, tag = 'smem constant byte address 0x4 - core index']
  #allocation1 [shape = 'u32[144,128]{1,0:T(1,128)}', space=vmem, size = 0x12000, scoped, tag = 'internal scratch']
  #allocation2 [shape = 'f32[12,128]{1,0:T(8,128)}', space=vmem, size = 0x2000, scoped, tag = 'scratch operand']
  %s0 = inlined_call_operand.vmem [shape: f32[4,12], index: 0, kind: input, shape index: {}]
  %s1 = inlined_call_operand.vmem [shape: f32[9,2], index: 1, kind: input, shape index: {}]
  %s2 = inlined_call_operand.hbm [shape: f32[4,256], index: 2, kind: output, shape index: {}]
  %s3 = sld [smem:[#allocation0]]
  $region41: #{tpu_custom_call.1} parent=0
    _
  %s5 = ssub.s32 1, %s3
  %s6 = scalar_select 0, %s5, %s3
  $region1: #{tpu_custom_call.1} parent=0
    #allocation3 [shape = 'u8[4096]{0}', space=vmem, size = 0x1000, scoped, tag = 'output window, operand 0']
    #allocation4 [shape = 's32[2]{0}', space=sflag, size = 0x8, scoped, tag = 'scoped memory for tpu_custom_call.1']
    %7 = vsyncpa [#allocation4], 0
    %s8 = scalar_lea.sflag [#allocation4], 1
    %9 = vsyncpa %s8, 0
    loop: start=0, step=1, limit=4
    $region2: #{tpu_custom_call.1} parent=1 // loop_pre_header
      _
    $region3: #{tpu_custom_call.1} parent=1 // loop_header
      %s11 = sphi 0, %s15
      %p12 = scmp.ge.s32.totalorder %s11, 4
      %s19 = sphi 0, %s19
      %s21 = sphi 0, %s19
      %s22 = sphi 0, %s21
      %s36 = sphi 0, %s22
      %s40 = sphi 0, %s40
      %s42 = sphi 0, %s40
      %s43 = sphi 0, %s42
      %s57 = sphi 0, %s43
      %s63 = sphi 0, %s65
      %s66 = sphi 0, %s63
      %s67 = sphi 0, %s66
      %s83 = sphi 0, %s67
    $region4: #{tpu_custom_call.1} parent=1 // loop_header_branch
      %14 = sbr.rel (%p12) target = $region8
    $region5: #{tpu_custom_call.1} parent=1 // loop_body
      %s16 = ssub.s32 %s11, 1
      %s17 = ssub.s32 %s11, 2
      %s18 = sadd.s32 %s11, 1
      %s20 = sadd.s32 %s19, 1
      %p23 = scmp.eq.s32.totalorder %s11, 1
      %p24 = scmp.ne.s32.totalorder %s19, %s21
      %p25 = scmp.eq.s32.totalorder %s11, 0
      %p26 = por %p24, %p25
      %p27 = scmp.ne.s32.totalorder %s19, %s21
      %p28 = scmp.eq.s32.totalorder %s16, 1
      %p29 = por %p27, %p28
      %p30 = scmp.ne.s32.totalorder %s21, %s22
      %p31 = scmp.eq.s32.totalorder %s16, 0
      %p32 = por %p30, %p31
      %p33 = scmp.ne.s32.totalorder %s21, %s22
      %p34 = scmp.eq.s32.totalorder %s17, 1
      %p35 = por %p33, %p34
      %p37 = scmp.ne.s32.totalorder %s22, %s36
      %p38 = scmp.eq.s32.totalorder %s17, 0
      %p39 = por %p37, %p38
      %s41 = sadd.s32 %s40, 1
      %p44 = scmp.eq.s32.totalorder %s11, 1
      %p45 = scmp.ne.s32.totalorder %s40, %s42
      %p46 = scmp.eq.s32.totalorder %s11, 0
      %p47 = por %p45, %p46
      %p48 = scmp.ne.s32.totalorder %s40, %s42
      %p49 = scmp.eq.s32.totalorder %s16, 1
      %p50 = por %p48, %p49
      %p51 = scmp.ne.s32.totalorder %s42, %s43
      %p52 = scmp.eq.s32.totalorder %s16, 0
      %p53 = por %p51, %p52
      %p54 = scmp.ne.s32.totalorder %s42, %s43
      %p55 = scmp.eq.s32.totalorder %s17, 1
      %p56 = por %p54, %p55
      %p58 = scmp.ne.s32.totalorder %s43, %s57
      %p59 = scmp.eq.s32.totalorder %s17, 0
      %p60 = por %p58, %p59
      %s61 = ssub.s32 %s11, %s18
      %p62 = scmp.eq.s32.totalorder %s61, 0
      %s64 = sadd.s32 %s63, 1
      %s65 = scalar_select %p62, %s63, %s64
      %p68 = pneg %p62
      %p69 = scmp.eq.s32.totalorder %s11, 1
      %p70 = por %p68, %p69
      %p71 = scmp.ne.s32.totalorder %s63, %s66
      %p72 = scmp.eq.s32.totalorder %s11, 0
      %p73 = por %p71, %p72
      %p74 = scmp.ne.s32.totalorder %s63, %s66
      %p75 = scmp.eq.s32.totalorder %s16, 1
      %p76 = por %p74, %p75
      %p77 = scmp.ne.s32.totalorder %s66, %s67
      %p78 = scmp.eq.s32.totalorder %s16, 0
      %p79 = por %p77, %p78
      %p80 = scmp.ne.s32.totalorder %s66, %s67
      %p81 = scmp.eq.s32.totalorder %s17, 1
      %p82 = por %p80, %p81
      %p84 = scmp.ne.s32.totalorder %s67, %s83
      %p85 = scmp.eq.s32.totalorder %s17, 0
      %p86 = por %p84, %p85
      %p87 = scmp.le.s32.totalorder 1, %s11
      %p88 = scmp.lt.s32.totalorder %s11, 3
      %p89 = pnand %p87, %p88
      %p90 = pneg %p89
      // Predicated region
      $region9: #{tpu_custom_call.1} parent=5 // pred_check
        _
      $region10: #{tpu_custom_call.1} parent=5 // pred_check_branch
        %92 = sbr.rel (%p89) target = $region12
      $region11: #{tpu_custom_call.1} parent=5 // pred_region
        %s93 = ssub.s32 %s11, 1
        // Predicated region
        $region13: #{tpu_custom_call.1} parent=11 // pred_check
          %p94 = pneg %p32
        $region14: #{tpu_custom_call.1} parent=11 // pred_check_branch
          %96 = sbr.rel (%p94) target = $region16
        $region15: #{tpu_custom_call.1} parent=11 // pred_region
          _
        $region16: #{tpu_custom_call.1} parent=11 // pred_fallthru
          _
        // Predicated region
        $region17: #{tpu_custom_call.1} parent=11 // pred_check
          %p97 = pneg %p53
        $region18: #{tpu_custom_call.1} parent=11 // pred_check_branch
          %99 = sbr.rel (%p97) target = $region20
        $region19: #{tpu_custom_call.1} parent=11 // pred_region
          _
        $region20: #{tpu_custom_call.1} parent=11 // pred_fallthru
          _
      $region12: #{tpu_custom_call.1} parent=5 // pred_fallthru
        _
      %p100 = scmp.lt.s32.totalorder %s11, 2
      // Predicated region
      $region21: #{tpu_custom_call.1} parent=5 // pred_check
        %p101 = pneg %p100
      $region22: #{tpu_custom_call.1} parent=5 // pred_check_branch
        %103 = sbr.rel (%p101) target = $region24
      $region23: #{tpu_custom_call.1} parent=5 // pred_region
        _
      $region24: #{tpu_custom_call.1} parent=5 // pred_fallthru
        _
      %p104 = scmp.le.s32.totalorder 1, %s11
      %p105 = scmp.lt.s32.totalorder %s11, 3
      %p106 = pnand %p104, %p105
      %p107 = pneg %p106
      // Predicated region
      $region25: #{tpu_custom_call.1} parent=5 // pred_check
        _
      $region26: #{tpu_custom_call.1} parent=5 // pred_check_branch
        %109 = sbr.rel (%p106) target = $region28
      $region27: #{tpu_custom_call.1} parent=5 // pred_region
        %s110 = ssub.s32 %s11, 1
        %p111 = pneg %p32
        %p112 = pneg %p29
        %p113 = pneg %p53
        %p114 = pneg %p50
        %p115 = pneg %p79
        %p116 = pneg %p76
        %s117 = sand.u32 %s66, 1
        %s118 = scalar_lea.sflag [#allocation4], %s117
        %s119 = sand.u32 %s66, 1
        %s120 = smul.addr %s119, 4
        %s121 = scalar_lea.vmem [#allocation3], %s120
        %s122 = smul.u32 %s16, 128
        %v123 = vld [vmem:[%s1] sm:$0xff]
        %v124 = vld [vmem:[%s1 + $0x8] sm:$0x1]
        %126 = vset.pattern.permute.xlu0 0
        %127 = vperm.xlu0 %126, %v123
        %v128 = vpop.permute.xlu0 %127
        %131 = vset.pattern.permute.xlu0 0
        %132 = vperm.xlu0 %131, %v124
        %v133 = vpop.permute.xlu0 %132
        %135 = vset.pattern.permute.xlu0 1
        %136 = vperm.xlu0 %135, %v123
        %v137 = vpop.permute.xlu0 %136
        %139 = vset.pattern.permute.xlu0 1
        %140 = vperm.xlu0 %139, %v124
        %v141 = vpop.permute.xlu0 %140
        %v143 = vlaneseq
        %v144 = vand.u32 %v143, 127
        %v145 = vstv %s122
        %v146 = vadd.s32 %v144, %v145
        %v147 = vcvt.s32.f32 %v146
        %v148 = vadd.f32 %v147, 0.5
        %v149 = vmul.f32 %v148, 0.0625
        %v150 = vfloor.f32 %v149
        %v151 = vmul.f32 %v150, 16.0
        %v152 = vsub.f32 %v147, %v151
        %v153 = vmul.f32 %v152, 0.13333334
        %v154 = vsub.f32 %v153, 1.0
        %v155 = vmul.f32 %v150, 0.13333334
        %v156 = vsub.f32 %v155, 1.0
        %v157 = vsub.f32 %v154, %v128
        %v158 = vsub.f32 %v154, %v133
        %v159 = vsub.f32 %v156, %v137
        %v160 = vsub.f32 %v156, %v141
        %v161 = vmul.f32 %v157, %v157
        %v162 = vmul.f32 %v158, %v158
        %v163 = vmul.f32 %v159, %v159
        %v164 = vmul.f32 %v160, %v160
        %v165 = vadd.f32 %v161, %v163
        %v166 = vadd.f32 %v162, %v164
        %vm167 = vcmp.eq.f32.partialorder %v165, 0.0
        %vm168 = vcmp.eq.f32.partialorder %v166, 0.0
        %v169 = vsel %vm167, 1.0, %v165
        %v170 = vsel %vm168, 1.0, %v166
        %v171 = vlog2.pop %v169
        %v172 = vmul.f32 %v171, 0.6931472
        %v173 = vlog2.pop %v170
        %v174 = vmul.f32 %v173, 0.6931472
        %v175 = vmul.f32 %v169, %v172
        %v176 = vmul.f32 %v170, %v174
        %177 = vst [vmem:[#allocation2] sm:$0xff] %v175
        %178 = vst [vmem:[#allocation2 + $0x8] sm:$0x1] %v176
        %179 = vst [vmem:[#allocation2 + $0x9] sm:$0x1] 1.0
        %180 = vst [vmem:[#allocation2 + $0xa] sm:$0x1] %v154
        %181 = vst [vmem:[#allocation2 + $0xb] sm:$0x1] %v156
        %v182 = vld [vmem:[%s0] sm:$0xf]
        %v183 = vld [vmem:[#allocation2] sm:$0xff]
        %v184 = vld [vmem:[#allocation2 + $0x8] sm:$0xf]
        %vm185 = vcmask 97280
        %v187 = vsel %vm185, %v182, 0
        %vm189 = vcmask 1043456
        %v191 = vsel %vm189, %v184, 0
        %193 = vmatprep.subr.mxu0 0.0
        %194 = vmatpush1.msra.mxu0 0.0
        %195 = vmatprep.subr.mxu0 0.0
        %196 = vmatpush1.msra.mxu0 0.0
        %197 = vmatprep.subr.mxu0 0.0
        %198 = vmatpush1.msra.mxu0 0.0
        %199 = vmatprep.subr.mxu0 0.0
        %200 = vmatpush1.msra.mxu0 0.0
        %201 = vmatprep.subr.mxu0 0.0
        %202 = vmatpush1.msra.mxu0 0.0
        %203 = vmatprep.subr.mxu0 0.0
        %204 = vmatpush1.msra.mxu0 0.0
        %205 = vmatprep.subr.mxu0 0.0
        %206 = vmatpush1.msra.mxu0 0.0
        %207 = vmatprep.subr.mxu0 0.0
        %208 = vmatpush1.msra.mxu0 0.0
        %209 = vmatprep.subr.mxu0 0.0
        %210 = vmatpush1.msra.mxu0 0.0
        %211 = vmatprep.subr.mxu0 0.0
        %212 = vmatpush1.msra.mxu0 0.0
        %213 = vmatprep.subr.mxu0 0.0
        %214 = vmatpush1.msra.mxu0 0.0
        %215 = vmatprep.subr.mxu0 0.0
        %216 = vmatpush1.msra.mxu0 0.0
        %217 = vmatprep.subr.mxu0 0.0
        %218 = vmatpush1.msra.mxu0 0.0
        %219 = vmatprep.subr.mxu0 0.0
        %220 = vmatpush1.msra.mxu0 0.0
        %221 = vmatprep.subr.mxu0 0.0
        %222 = vmatpush1.msra.mxu0 %v191
        %223 = vmatprep.subr.mxu0 0.0
        %224 = vmatpush1.msra.mxu0 %v183
        %225 = vmatprep.subr.mxu0 0.0
        %226 = vmatpush2.msra.mxu0 0.0
        %227 = vmatprep.subr.mxu0 0.0
        %228 = vmatpush2.msra.mxu0 0.0
        %229 = vmatprep.subr.mxu0 0.0
        %230 = vmatpush2.msra.mxu0 0.0
        %231 = vmatprep.subr.mxu0 0.0
        %232 = vmatpush2.msra.mxu0 0.0
        %233 = vmatprep.subr.mxu0 0.0
        %234 = vmatpush2.msra.mxu0 0.0
        %235 = vmatprep.subr.mxu0 0.0
        %236 = vmatpush2.msra.mxu0 0.0
        %237 = vmatprep.subr.mxu0 0.0
        %238 = vmatpush2.msra.mxu0 0.0
        %239 = vmatprep.subr.mxu0 0.0
        %240 = vmatpush2.msra.mxu0 0.0
        %241 = vmatprep.subr.mxu0 0.0
        %242 = vmatpush2.msra.mxu0 0.0
        %243 = vmatprep.subr.mxu0 0.0
        %244 = vmatpush2.msra.mxu0 0.0
        %245 = vmatprep.subr.mxu0 0.0
        %246 = vmatpush2.msra.mxu0 0.0
        %247 = vmatprep.subr.mxu0 0.0
        %248 = vmatpush2.msra.mxu0 0.0
        %249 = vmatprep.subr.mxu0 0.0
        %250 = vmatpush2.msra.mxu0 0.0
        %251 = vmatprep.subr.mxu0 0.0
        %252 = vmatpush2.msra.mxu0 0.0
        %253 = vmatprep.subr.mxu0 0.0
        %254 = vmatpush2.msra.mxu0 0.0
        %255 = vmatprep.subr.mxu0 0.0
        %256 = vmatpush2.msra.mxu0 0.0
        %257 = vmatprep.mubr.f32.mxu0 0.0
        %258 = vmatmul.mubr.f32.gmra.mxu0 %v187
        %v259 = vpop.f32.mrf.mxu0
        %v260 = vadd.f32 0.0, %v259
        %v261 = vpop.f32.mrf.mxu0
        %262 = vdwg.mxu0
        %263 = vst [vmem:[%s121] sm:$0xf] %v260
        %s264 = sand.u32 %s66, 1
        %s265 = scalar_lea.sflag [#allocation4], %s264
        %s266 = sand.u32 %s66, 1
        %s267 = smul.addr %s266, 4
        %s268 = scalar_lea.vmem [#allocation3], %s267
        // Predicated region
        $region29: #{tpu_custom_call.1} parent=27 // pred_check
          %p269 = pneg %p76
        $region30: #{tpu_custom_call.1} parent=27 // pred_check_branch
          %271 = sbr.rel (%p269) target = $region32
        $region31: #{tpu_custom_call.1} parent=27 // pred_region
          %s273 = ssub.s32 64, 64
          %274 = vsyncadd %s265, %s273
          %s275 = smul.addr %s16, 64
          %s276 = scalar_lea.hbm %s2, %s275
          %s278 = sshll.u32 %s268, 4
          %s279 = int_to_ptr.vmem [resolvable:$true] %s278
          %281 = dma.vmem_to_hbm [thread:$0]  %s279, 64, %s276, %s265
        $region32: #{tpu_custom_call.1} parent=27 // pred_fallthru
          _
      $region28: #{tpu_custom_call.1} parent=5 // pred_fallthru
        _
      %p282 = scmp.le.s32.totalorder 2, %s11
      // Predicated region
      $region33: #{tpu_custom_call.1} parent=5 // pred_check
        %p283 = pneg %p282
      $region34: #{tpu_custom_call.1} parent=5 // pred_check_branch
        %285 = sbr.rel (%p283) target = $region36
      $region35: #{tpu_custom_call.1} parent=5 // pred_region
        %s286 = ssub.s32 %s11, 2
        // Predicated region
        $region37: #{tpu_custom_call.1} parent=35 // pred_check
          %p287 = pneg %p82
        $region38: #{tpu_custom_call.1} parent=35 // pred_check_branch
          %289 = sbr.rel (%p287) target = $region40
        $region39: #{tpu_custom_call.1} parent=35 // pred_region
          %s290 = sand.u32 %s67, 1
          %s291 = scalar_lea.sflag [#allocation4], %s290
          %s292 = sand.u32 %s67, 1
          %s293 = smul.addr %s292, 4
          %s294 = scalar_lea.vmem [#allocation3], %s293
          %295 = dma.done %s291, 64
        $region40: #{tpu_custom_call.1} parent=35 // pred_fallthru
          _
      $region36: #{tpu_custom_call.1} parent=5 // pred_fallthru
        _
    $region6: #{tpu_custom_call.1} parent=1 // loop_footer
      %s15 = sadd.s32 1, %s11
    $region7: #{tpu_custom_call.1} parent=1 // loop_footer_branch
      %10 = sbr.rel target = $region3
    $region8: #{tpu_custom_call.1} parent=1 // loop_exit
      _
    %296 = vsyncpa [#allocation4], 1
    %s297 = scalar_lea.sflag [#allocation4], 1
    %298 = vsyncpa %s297, 1

</llo_original>
